<compile_context>
chip_gen: v7x
topology: tpu7x:2x2x1
jax: 0.10.0
libtpu: 0.0.40
codegen_flags: <defaults>
</compile_context>

<pallas_src>
import functools
import math

import jax
import jax.numpy as jnp
from jax.experimental import pallas as pl
from jax.experimental.pallas import tpu as pltpu


def _round_up(x, m):
    return (x + m - 1) // m * m


def _pad_to(a, shape):
    return jnp.pad(a, [(0, t - s) for s, t in zip(a.shape, shape)])


# ----------------------------------------------------------------------------
# Fused encoder kernel: grid = (batch, layer).  The output block (index depends
# only on the batch axis) stays resident in VMEM across the layer axis and
# carries the hidden state h between layers.
# ----------------------------------------------------------------------------
def _encoder_kernel(x_ref, w_inp_ref, b_inp_ref, w_qkv_ref, b_qkv_ref, o_ref,
                    *, hp, scale):
    l = pl.program_id(1)

    # Layer 0: input projection + ReLU, written into the resident output block.
    @pl.when(l == 0)
    def _():
        h0 = jnp.dot(x_ref[...], w_inp_ref[...],
                     preferred_element_type=jnp.float32)
        h0 = h0 + b_inp_ref[...]
        o_ref[...] = jnp.maximum(h0, 0.0).astype(o_ref.dtype)

    h = o_ref[...].astype(jnp.float32)                        # (S, Hp)

    # Fused Q|K|V projection: one MXU pass with N = 3*Hp instead of 3 passes.
    qkv = jnp.dot(h.astype(w_qkv_ref.dtype), w_qkv_ref[...],
                  preferred_element_type=jnp.float32)
    qkv = qkv + b_qkv_ref[...]                                # (S, 3*Hp)
    q = qkv[:, :hp] * scale              # fold 1/sqrt(n_hid) into Q
    k = qkv[:, hp:2 * hp]
    v = qkv[:, 2 * hp:]

    # scores (S, S): contract the feature dims directly (no explicit transpose).
    s = jax.lax.dot_general(q, k, (((1,), (1,)), ((), ())),
                            preferred_element_type=jnp.float32)

    # numerically-stable softmax over the last dim; divide goes to the EUP.
    s = s - jnp.max(s, axis=-1, keepdims=True)
    e = jnp.exp(s)
    denom = jnp.sum(e, axis=-1, keepdims=True)
    p = e * pl.reciprocal(denom, approx=True)

    attn = jnp.dot(p.astype(v.dtype), v, preferred_element_type=jnp.float32)
    o_ref[...] = (h + attn).astype(o_ref.dtype)               # residual


# ----------------------------------------------------------------------------
# Wrapper: pad feature dims to multiples of 128, stack per-layer QKV weights,
# run the single fused pallas_call, then slice padding off.
# ----------------------------------------------------------------------------
def transformer_encoder(x, w_inp, b_inp, layers):
    B, S, n_inp = x.shape
    n_hid = w_inp.shape[1]
    n_dep = len(layers)
    assert n_dep >= 1
    assert S % 8 == 0  # TODO(synk): pad + key-mask for ragged sequence lengths.

    cin_p = _round_up(n_inp, 128)
    hp = _round_up(n_hid, 128)

    x_p = _pad_to(x, (B, S, cin_p))
    w_inp_p = _pad_to(w_inp, (cin_p, hp))
    b_inp_p = _pad_to(b_inp.reshape(1, n_hid), (1, hp))

    # Stack layers: (n_dep, Hp, 3*Hp) weights and (n_dep, 1, 3*Hp) biases.
    # Zero-padding the feature columns keeps padded lanes of h identically zero
    # through every layer (projection, attention, residual), so the final slice
    # recovers the exact unpadded result.
    w_qkv = jnp.stack([
        jnp.concatenate([_pad_to(wq, (hp, hp)),
                         _pad_to(wk, (hp, hp)),
                         _pad_to(wv, (hp, hp))], axis=1)
        for (wq, wk, wv, _bq, _bk, _bv) in layers])
    b_qkv = jnp.stack([
        jnp.concatenate([_pad_to(bq.reshape(1, n_hid), (1, hp)),
                         _pad_to(bk.reshape(1, n_hid), (1, hp)),
                         _pad_to(bv.reshape(1, n_hid), (1, hp))], axis=1)
        for (_wq, _wk, _wv, bq, bk, bv) in layers])

    kernel = functools.partial(_encoder_kernel, hp=hp,
                               scale=1.0 / math.sqrt(n_hid))

    out_p = pl.pallas_call(
        kernel,
        out_shape=jax.ShapeDtypeStruct((B, S, hp), x.dtype),
        grid=(B, n_dep),
        in_specs=[
            # per-batch input tile; constant along the layer axis -> fetched once
            pl.BlockSpec((pl.Squeezed(), S, cin_p), lambda b, l: (b, 0, 0)),
            # grid-constant input-projection weights/bias (resident in VMEM)
            pl.BlockSpec((cin_p, hp), lambda b, l: (0, 0)),
            pl.BlockSpec((1, hp), lambda b, l: (0, 0)),
            # per-layer fused QKV weights/bias, streamed (double-buffered) along l
            pl.BlockSpec((pl.Squeezed(), hp, 3 * hp), lambda b, l: (l, 0, 0)),
            pl.BlockSpec((pl.Squeezed(), 1, 3 * hp), lambda b, l: (l, 0, 0)),
        ],
        # same block index for every l -> output tile is the resident carry `h`
        out_specs=pl.BlockSpec((pl.Squeezed(), S, hp), lambda b, l: (b, 0, 0)),
        compiler_params=pltpu.CompilerParams(
            dimension_semantics=("parallel", "arbitrary")),
    )(x_p, w_inp_p, b_inp_p, w_qkv, b_qkv)

    return out_p[:, :, :n_hid]


# pure-JAX reference for correctness checking
def reference(x, w_inp, b_inp, layers):
    h = jax.nn.relu(x @ w_inp + b_inp)
    n_hid = w_inp.shape[1]
    for (wq, wk, wv, bq, bk, bv) in layers:
        q = h @ wq + bq
        k = h @ wk + bk
        v = h @ wv + bv
        s = jnp.einsum("bqd,bkd->bqk", q, k) / math.sqrt(n_hid)
        p = jax.nn.softmax(s, axis=-1)
        h = h + jnp.einsum("bqk,bkd->bqd", p, v)
    return h


if __name__ == "__main__":
    B, S, n_inp, n_hid, n_dep = 2, 8, 16, 32, 2

    key = jax.random.PRNGKey(0)
    k_iter = iter(jax.random.split(key, 3 + 6 * n_dep))

    x = jax.random.normal(next(k_iter), (B, S, n_inp), jnp.float32)

    # deterministic parameter init (synthetic, not a checkpoint)
    w_inp = jax.random.normal(next(k_iter), (n_inp, n_hid), jnp.float32) * 0.1
    b_inp = jax.random.normal(next(k_iter), (n_hid,), jnp.float32) * 0.1
    layers = []
    for _ in range(n_dep):
        wq = jax.random.normal(next(k_iter), (n_hid, n_hid), jnp.float32) * 0.1
        wk = jax.random.normal(next(k_iter), (n_hid, n_hid), jnp.float32) * 0.1
        wv = jax.random.normal(next(k_iter), (n_hid, n_hid), jnp.float32) * 0.1
        bq = jax.random.normal(next(k_iter), (n_hid,), jnp.float32) * 0.1
        bk = jax.random.normal(next(k_iter), (n_hid,), jnp.float32) * 0.1
        bv = jax.random.normal(next(k_iter), (n_hid,), jnp.float32) * 0.1
        layers.append((wq, wk, wv, bq, bk, bv))

    out = transformer_encoder(x, w_inp, b_inp, layers)
    out = jax.block_until_ready(out)

    ref = reference(x, w_inp, b_inp, layers)
    # tolerance loosened vs exact fp32 because the softmax divide uses the EUP
    # approximate reciprocal (pl.reciprocal(approx=True)).
    if not jnp.allclose(out, ref, atol=2e-2, rtol=2e-2):
        raise AssertionError("Pallas output does not match JAX reference")

    print("KERNEL_OK")
</pallas_src>

<mosaic_0001>
module attributes {stable_mosaic.version = 11 : i64} {
  func.func @_encoder_kernel(%arg0: i32, %arg1: i32, %arg2: memref<1x8x128xf32, #tpu.memory_space<vmem>>, %arg3: memref<128x128xf32, #tpu.memory_space<vmem>>, %arg4: memref<1x128xf32, #tpu.memory_space<vmem>>, %arg5: memref<1x128x384xf32, #tpu.memory_space<vmem>>, %arg6: memref<1x1x384xf32, #tpu.memory_space<vmem>>, %arg7: memref<1x8x128xf32, #tpu.memory_space<vmem>>) attributes {dimension_semantics = [#tpu.dimension_semantics<parallel>, #tpu.dimension_semantics<arbitrary>], iteration_bounds = array<i64: 2, 2>, scalar_prefetch = 0 : i64, scratch_operands = 0 : i64, tpu.core_type = #tpu.core_type<tc>, window_params = [{transform_indices = @transform_0, window_bounds = array<i64: 1, 8, 128>}, {pipeline_mode = #tpu.pipeline_mode<synchronous>, transform_indices = @transform_1, window_bounds = array<i64: 128, 128>}, {pipeline_mode = #tpu.pipeline_mode<synchronous>, transform_indices = @transform_2, window_bounds = array<i64: 1, 128>}, {transform_indices = @transform_3, window_bounds = array<i64: 1, 128, 384>}, {transform_indices = @transform_4, window_bounds = array<i64: 1, 1, 384>}, {transform_indices = @transform_5, window_bounds = array<i64: 1, 8, 128>}]} {
    %c0_i32 = arith.constant 0 : i32
    %0 = arith.cmpi eq, %arg1, %c0_i32 : i32
    %1 = arith.extui %0 : i1 to i32
    %c0_i32_0 = arith.constant 0 : i32
    %2 = arith.cmpi ne, %1, %c0_i32_0 : i32
    scf.if %2 {
      %c0_17 = arith.constant 0 : index
      %c0_18 = arith.constant 0 : index
      %c0_19 = arith.constant 0 : index
      %33 = vector.load %arg2[%c0_17, %c0_18, %c0_19] : memref<1x8x128xf32, #tpu.memory_space<vmem>>, vector<1x8x128xf32>
      %34 = vector.shape_cast %33 : vector<1x8x128xf32> to vector<8x128xf32>
      %c0_20 = arith.constant 0 : index
      %c0_21 = arith.constant 0 : index
      %35 = vector.load %arg3[%c0_20, %c0_21] : memref<128x128xf32, #tpu.memory_space<vmem>>, vector<128x128xf32>
      %cst_22 = arith.constant dense<0.000000e+00> : vector<8x128xf32>
      %36 = tpu.matmul %34, %35, %cst_22 {dimension_numbers = #tpu.dot_dimension_numbers<[1], [0], [0], [1], [0, 0, 1, 1], [], []>} : vector<8x128xf32>, vector<128x128xf32>, vector<8x128xf32> -> vector<8x128xf32>
      %c0_23 = arith.constant 0 : index
      %c0_24 = arith.constant 0 : index
      %37 = vector.load %arg4[%c0_23, %c0_24] : memref<1x128xf32, #tpu.memory_space<vmem>>, vector<1x128xf32>
      %38 = vector.broadcast %37 : vector<1x128xf32> to vector<8x128xf32>
      %39 = arith.addf %36, %38 : vector<8x128xf32>
      %cst_25 = arith.constant 0.000000e+00 : f32
      %40 = vector.broadcast %cst_25 : f32 to vector<8x128xf32>
      %41 = arith.maximumf %39, %40 : vector<8x128xf32>
      %c0_26 = arith.constant 0 : index
      %c0_27 = arith.constant 0 : index
      %c0_28 = arith.constant 0 : index
      %42 = vector.load %arg7[%c0_26, %c0_27, %c0_28] : memref<1x8x128xf32, #tpu.memory_space<vmem>>, vector<1x8x128xf32>
      %43 = vector.shape_cast %42 : vector<1x8x128xf32> to vector<8x128xf32>
      %44 = vector.shape_cast %41 : vector<8x128xf32> to vector<1x8x128xf32>
      tpu.vector_store %arg7[%c0_26, %c0_27, %c0_28], %44 {strides = array<i32>} : memref<1x8x128xf32, #tpu.memory_space<vmem>>, vector<1x8x128xf32>,
    } else {
    }
    %c0 = arith.constant 0 : index
    %c0_1 = arith.constant 0 : index
    %c0_2 = arith.constant 0 : index
    %3 = vector.load %arg7[%c0, %c0_1, %c0_2] : memref<1x8x128xf32, #tpu.memory_space<vmem>>, vector<1x8x128xf32>
    %4 = vector.shape_cast %3 : vector<1x8x128xf32> to vector<8x128xf32>
    %c0_3 = arith.constant 0 : index
    %c0_4 = arith.constant 0 : index
    %c0_5 = arith.constant 0 : index
    %5 = vector.load %arg5[%c0_3, %c0_4, %c0_5] : memref<1x128x384xf32, #tpu.memory_space<vmem>>, vector<1x128x384xf32>
    %6 = vector.shape_cast %5 : vector<1x128x384xf32> to vector<128x384xf32>
    %cst = arith.constant dense<0.000000e+00> : vector<8x384xf32>
    %7 = tpu.matmul %4, %6, %cst {dimension_numbers = #tpu.dot_dimension_numbers<[1], [0], [0], [1], [0, 0, 1, 1], [], []>} : vector<8x128xf32>, vector<128x384xf32>, vector<8x384xf32> -> vector<8x384xf32>
    %c0_6 = arith.constant 0 : index
    %c0_7 = arith.constant 0 : index
    %c0_8 = arith.constant 0 : index
    %8 = vector.load %arg6[%c0_6, %c0_7, %c0_8] : memref<1x1x384xf32, #tpu.memory_space<vmem>>, vector<1x1x384xf32>
    %9 = vector.shape_cast %8 : vector<1x1x384xf32> to vector<1x384xf32>
    %10 = vector.broadcast %9 : vector<1x384xf32> to vector<8x384xf32>
    %11 = arith.addf %7, %10 : vector<8x384xf32>
    %12 = vector.extract_strided_slice %11 {offsets = [0, 0], sizes = [8, 128], strides = [1, 1]} : vector<8x384xf32> to vector<8x128xf32>
    %cst_9 = arith.constant 0.176776692 : f32
    %13 = vector.broadcast %cst_9 : f32 to vector<8x128xf32>
    %14 = arith.mulf %12, %13 : vector<8x128xf32>
    %15 = vector.extract_strided_slice %11 {offsets = [0, 128], sizes = [8, 128], strides = [1, 1]} : vector<8x384xf32> to vector<8x128xf32>
    %16 = vector.extract_strided_slice %11 {offsets = [0, 256], sizes = [8, 128], strides = [1, 1]} : vector<8x384xf32> to vector<8x128xf32>
    %cst_10 = arith.constant dense<0.000000e+00> : vector<8x8xf32>
    %17 = tpu.matmul %14, %15, %cst_10 {dimension_numbers = #tpu.dot_dimension_numbers<[1], [1], [0], [0], [0, 0, 1, 0], [], []>} : vector<8x128xf32>, vector<8x128xf32>, vector<8x8xf32> -> vector<8x8xf32>
    %cst_11 = arith.constant dense<0xFF800000> : vector<8xf32>
    %18 = vector.multi_reduction <maximumf>, %17, %cst_11 [1] : vector<8x8xf32> to vector<8xf32>
    %19 = vector.shape_cast %18 : vector<8xf32> to vector<8x1xf32>
    %20 = vector.broadcast %19 : vector<8x1xf32> to vector<8x8xf32>
    %21 = arith.subf %17, %20 : vector<8x8xf32>
    %22 = math.exp %21 : vector<8x8xf32>
    %cst_12 = arith.constant dense<0.000000e+00> : vector<8xf32>
    %23 = vector.multi_reduction <add>, %22, %cst_12 [1] : vector<8x8xf32> to vector<8xf32>
    %24 = vector.shape_cast %23 : vector<8xf32> to vector<8x1xf32>
    %25 = tpu.reciprocal %24 {approx = true} : vector<8x1xf32> -> vector<8x1xf32>
    %26 = vector.broadcast %25 : vector<8x1xf32> to vector<8x8xf32>
    %27 = arith.mulf %22, %26 : vector<8x8xf32>
    %cst_13 = arith.constant dense<0.000000e+00> : vector<8x128xf32>
    %28 = tpu.matmul %27, %16, %cst_13 {dimension_numbers = #tpu.dot_dimension_numbers<[1], [0], [0], [1], [0, 0, 1, 1], [], []>} : vector<8x8xf32>, vector<8x128xf32>, vector<8x128xf32> -> vector<8x128xf32>
    %29 = arith.addf %4, %28 : vector<8x128xf32>
    %c0_14 = arith.constant 0 : index
    %c0_15 = arith.constant 0 : index
    %c0_16 = arith.constant 0 : index
    %30 = vector.load %arg7[%c0_14, %c0_15, %c0_16] : memref<1x8x128xf32, #tpu.memory_space<vmem>>, vector<1x8x128xf32>
    %31 = vector.shape_cast %30 : vector<1x8x128xf32> to vector<8x128xf32>
    %32 = vector.shape_cast %29 : vector<8x128xf32> to vector<1x8x128xf32>
    tpu.vector_store %arg7[%c0_14, %c0_15, %c0_16], %32 {strides = array<i32>} : memref<1x8x128xf32, #tpu.memory_space<vmem>>, vector<1x8x128xf32>,
    return
  }
  func.func @transform_0(%arg0: i32, %arg1: i32) -> (i32, i32, i32) {
    %c0_i32 = arith.constant 0 : i32
    %c0_i32_0 = arith.constant 0 : i32
    %c0_i32_1 = arith.constant 0 : i32
    return %arg0, %c0_i32, %c0_i32_0 : i32, i32, i32
  }
  func.func @transform_1(%arg0: i32, %arg1: i32) -> (i32, i32) {
    %c0_i32 = arith.constant 0 : i32
    %c0_i32_0 = arith.constant 0 : i32
    %c0_i32_1 = arith.constant 0 : i32
    return %c0_i32, %c0_i32_0 : i32, i32
  }
  func.func @transform_2(%arg0: i32, %arg1: i32) -> (i32, i32) {
    %c0_i32 = arith.constant 0 : i32
    %c0_i32_0 = arith.constant 0 : i32
    %c0_i32_1 = arith.constant 0 : i32
    return %c0_i32, %c0_i32_0 : i32, i32
  }
  func.func @transform_3(%arg0: i32, %arg1: i32) -> (i32, i32, i32) {
    %c0_i32 = arith.constant 0 : i32
    %c0_i32_0 = arith.constant 0 : i32
    %c0_i32_1 = arith.constant 0 : i32
    return %arg1, %c0_i32, %c0_i32_0 : i32, i32, i32
  }
  func.func @transform_4(%arg0: i32, %arg1: i32) -> (i32, i32, i32) {
    %c0_i32 = arith.constant 0 : i32
    %c0_i32_0 = arith.constant 0 : i32
    %c0_i32_1 = arith.constant 0 : i32
    return %arg1, %c0_i32, %c0_i32_0 : i32, i32, i32
  }
  func.func @transform_5(%arg0: i32, %arg1: i32) -> (i32, i32, i32) {
    %c0_i32 = arith.constant 0 : i32
    %c0_i32_0 = arith.constant 0 : i32
    %c0_i32_1 = arith.constant 0 : i32
    return %arg0, %c0_i32, %c0_i32_0 : i32, i32, i32
  }
}

</mosaic_0001>

<llo_original>
// kernel: tpu_custom_call.1
$region0: #{tpu_custom_call.1}
  #allocation0 [shape = 'u32[]', space=smem, size = 0x4, offset = 0x4, fixed_abs, tag = 'smem constant byte address 0x4 - core index']
  #allocation1 [shape = 'u32[144,128]{1,0:T(1,128)}', space=vmem, size = 0x12000, scoped, tag = 'internal scratch']
  %s0 = inlined_call_operand.hbm [shape: f32[2,8,128], index: 0, kind: input, shape index: {}]
  %s1 = inlined_call_operand.hbm [shape: f32[128,128], index: 1, kind: input, shape index: {}]
  %s2 = inlined_call_operand.vmem [shape: f32[1,128], index: 2, kind: input, shape index: {}]
  %s3 = inlined_call_operand.hbm [shape: f32[2,128,384], index: 3, kind: input, shape index: {}]
  %s4 = inlined_call_operand.vmem [shape: f32[2,1,384], index: 4, kind: input, shape index: {}]
  %s5 = inlined_call_operand.hbm [shape: f32[2,8,128], index: 5, kind: output, shape index: {}]
  %s6 = sld [smem:[#allocation0]]
  $region69: #{tpu_custom_call.1} parent=0
    _
  %s8 = ssub.s32 1, %s6
  %s9 = scalar_select 0, %s8, %s6
  $region1: #{tpu_custom_call.1} parent=0
    #allocation2 [shape = 'u8[8192]{0}', space=vmem, size = 0x2000, scoped, tag = 'input window, operand 0']
    #allocation3 [shape = 's32[2]{0}', space=sflag, size = 0x8, scoped, tag = 'scoped memory for tpu_custom_call.1']
    #allocation4 [shape = 's32[2]{0}', space=sflag, size = 0x8, scoped, tag = 'scoped memory for tpu_custom_call.1']
    #allocation5 [shape = 'u8[65536]{0}', space=vmem, size = 0x10000, scoped, tag = 'input window, operand 1, single buffered']
    #allocation6 [shape = 's32[1]{0}', space=sflag, size = 0x4, scoped, tag = 'scoped memory for tpu_custom_call.1']
    #allocation7 [shape = 'u8[393216]{0}', space=vmem, size = 0x60000, scoped, tag = 'input window, operand 3']
    #allocation8 [shape = 'u8[8192]{0}', space=vmem, size = 0x2000, scoped, tag = 'output window, operand 0']
    %10 = vsyncpa [#allocation3], 0
    %s11 = scalar_lea.sflag [#allocation3], 1
    %12 = vsyncpa %s11, 0
    %13 = vsyncpa [#allocation6], 0
    %14 = vsyncpa [#allocation4], 0
    %s15 = scalar_lea.sflag [#allocation4], 1
    %16 = vsyncpa %s15, 0
    loop: start=0, step=1, limit=6
    $region2: #{tpu_custom_call.1} parent=1 // loop_pre_header
      _
    $region3: #{tpu_custom_call.1} parent=1 // loop_header
      %s18 = sphi 0, %s22
      %p19 = scmp.ge.s32.totalorder %s18, 6
      %s25 = sphi 0, %s37
      %s26 = sphi 0, %s33
      %s27 = sphi 0, %s25
      %s28 = sphi 0, %s26
      %s29 = sphi 0, %s27
      %s30 = sphi 0, %s28
      %s40 = sphi 0, %s42
      %s43 = sphi 0, %s40
      %s44 = sphi 0, %s43
      %s60 = sphi 0, %s44
      %s64 = sphi 0, %s64
      %s66 = sphi 0, %s64
      %s67 = sphi 0, %s66
      %s81 = sphi 0, %s67
      %s85 = sphi 0, %s85
      %s87 = sphi 0, %s85
      %s88 = sphi 0, %s87
      %s102 = sphi 0, %s88
      %s108 = sphi 0, %s110
      %s111 = sphi 0, %s108
      %s112 = sphi 0, %s111
      %s128 = sphi 0, %s112
      %s134 = sphi 0, %s136
      %s137 = sphi 0, %s134
      %s138 = sphi 0, %s137
      %s154 = sphi 0, %s138
      %s160 = sphi 0, %s162
      %s163 = sphi 0, %s160
      %s164 = sphi 0, %s163
      %s180 = sphi 0, %s164
    $region4: #{tpu_custom_call.1} parent=1 // loop_header_branch
      %21 = sbr.rel (%p19) target = $region8
    $region5: #{tpu_custom_call.1} parent=1 // loop_body
      %s23 = ssub.s32 %s18, 1
      %s24 = ssub.s32 %s18, 2
      %s31 = sadd.s32 1, %s26
      %p32 = scmp.ge.s32.totalorder %s31, 2
      %s33 = scalar_select %p32, 0, %s31
      %s34 = sadd.s32 1, %s25
      %s35 = scalar_select %p32, %s34, %s25
      %p36 = scmp.ge.s32.totalorder %s35, 2
      %s37 = scalar_select %p36, 0, %s35
      %s38 = ssub.s32 %s25, %s37
      %p39 = scmp.eq.s32.totalorder %s38, 0
      %s41 = sadd.s32 %s40, 1
      %s42 = scalar_select %p39, %s40, %s41
      %p45 = pneg %p39
      %p46 = scmp.eq.s32.totalorder %s18, 3
      %p47 = por %p45, %p46
      %p48 = scmp.ne.s32.totalorder %s40, %s43
      %p49 = scmp.eq.s32.totalorder %s18, 0
      %p50 = por %p48, %p49
      %p51 = scmp.ne.s32.totalorder %s40, %s43
      %p52 = scmp.eq.s32.totalorder %s23, 3
      %p53 = por %p51, %p52
      %p54 = scmp.ne.s32.totalorder %s43, %s44
      %p55 = scmp.eq.s32.totalorder %s23, 0
      %p56 = por %p54, %p55
      %p57 = scmp.ne.s32.totalorder %s43, %s44
      %p58 = scmp.eq.s32.totalorder %s24, 3
      %p59 = por %p57, %p58
      %p61 = scmp.ne.s32.totalorder %s44, %s60
      %p62 = scmp.eq.s32.totalorder %s24, 0
      %p63 = por %p61, %p62
      %s65 = sadd.s32 %s64, 1
      %p68 = scmp.eq.s32.totalorder %s18, 3
      %p69 = scmp.ne.s32.totalorder %s64, %s66
      %p70 = scmp.eq.s32.totalorder %s18, 0
      %p71 = por %p69, %p70
      %p72 = scmp.ne.s32.totalorder %s64, %s66
      %p73 = scmp.eq.s32.totalorder %s23, 3
      %p74 = por %p72, %p73
      %p75 = scmp.ne.s32.totalorder %s66, %s67
      %p76 = scmp.eq.s32.totalorder %s23, 0
      %p77 = por %p75, %p76
      %p78 = scmp.ne.s32.totalorder %s66, %s67
      %p79 = scmp.eq.s32.totalorder %s24, 3
      %p80 = por %p78, %p79
      %p82 = scmp.ne.s32.totalorder %s67, %s81
      %p83 = scmp.eq.s32.totalorder %s24, 0
      %p84 = por %p82, %p83
      %s86 = sadd.s32 %s85, 1
      %p89 = scmp.eq.s32.totalorder %s18, 3
      %p90 = scmp.ne.s32.totalorder %s85, %s87
      %p91 = scmp.eq.s32.totalorder %s18, 0
      %p92 = por %p90, %p91
      %p93 = scmp.ne.s32.totalorder %s85, %s87
      %p94 = scmp.eq.s32.totalorder %s23, 3
      %p95 = por %p93, %p94
      %p96 = scmp.ne.s32.totalorder %s87, %s88
      %p97 = scmp.eq.s32.totalorder %s23, 0
      %p98 = por %p96, %p97
      %p99 = scmp.ne.s32.totalorder %s87, %s88
      %p100 = scmp.eq.s32.totalorder %s24, 3
      %p101 = por %p99, %p100
      %p103 = scmp.ne.s32.totalorder %s88, %s102
      %p104 = scmp.eq.s32.totalorder %s24, 0
      %p105 = por %p103, %p104
      %s106 = ssub.s32 %s26, %s33
      %p107 = scmp.eq.s32.totalorder %s106, 0
      %s109 = sadd.s32 %s108, 1
      %s110 = scalar_select %p107, %s108, %s109
      %p113 = pneg %p107
      %p114 = scmp.eq.s32.totalorder %s18, 3
      %p115 = por %p113, %p114
      %p116 = scmp.ne.s32.totalorder %s108, %s111
      %p117 = scmp.eq.s32.totalorder %s18, 0
      %p118 = por %p116, %p117
      %p119 = scmp.ne.s32.totalorder %s108, %s111
      %p120 = scmp.eq.s32.totalorder %s23, 3
      %p121 = por %p119, %p120
      %p122 = scmp.ne.s32.totalorder %s111, %s112
      %p123 = scmp.eq.s32.totalorder %s23, 0
      %p124 = por %p122, %p123
      %p125 = scmp.ne.s32.totalorder %s111, %s112
      %p126 = scmp.eq.s32.totalorder %s24, 3
      %p127 = por %p125, %p126
      %p129 = scmp.ne.s32.totalorder %s112, %s128
      %p130 = scmp.eq.s32.totalorder %s24, 0
      %p131 = por %p129, %p130
      %s132 = ssub.s32 %s26, %s33
      %p133 = scmp.eq.s32.totalorder %s132, 0
      %s135 = sadd.s32 %s134, 1
      %s136 = scalar_select %p133, %s134, %s135
      %p139 = pneg %p133
      %p140 = scmp.eq.s32.totalorder %s18, 3
      %p141 = por %p139, %p140
      %p142 = scmp.ne.s32.totalorder %s134, %s137
      %p143 = scmp.eq.s32.totalorder %s18, 0
      %p144 = por %p142, %p143
      %p145 = scmp.ne.s32.totalorder %s134, %s137
      %p146 = scmp.eq.s32.totalorder %s23, 3
      %p147 = por %p145, %p146
      %p148 = scmp.ne.s32.totalorder %s137, %s138
      %p149 = scmp.eq.s32.totalorder %s23, 0
      %p150 = por %p148, %p149
      %p151 = scmp.ne.s32.totalorder %s137, %s138
      %p152 = scmp.eq.s32.totalorder %s24, 3
      %p153 = por %p151, %p152
      %p155 = scmp.ne.s32.totalorder %s138, %s154
      %p156 = scmp.eq.s32.totalorder %s24, 0
      %p157 = por %p155, %p156
      %s158 = ssub.s32 %s25, %s37
      %p159 = scmp.eq.s32.totalorder %s158, 0
      %s161 = sadd.s32 %s160, 1
      %s162 = scalar_select %p159, %s160, %s161
      %p165 = pneg %p159
      %p166 = scmp.eq.s32.totalorder %s18, 3
      %p167 = por %p165, %p166
      %p168 = scmp.ne.s32.totalorder %s160, %s163
      %p169 = scmp.eq.s32.totalorder %s18, 0
      %p170 = por %p168, %p169
      %p171 = scmp.ne.s32.totalorder %s160, %s163
      %p172 = scmp.eq.s32.totalorder %s23, 3
      %p173 = por %p171, %p172
      %p174 = scmp.ne.s32.totalorder %s163, %s164
      %p175 = scmp.eq.s32.totalorder %s23, 0
      %p176 = por %p174, %p175
      %p177 = scmp.ne.s32.totalorder %s163, %s164
      %p178 = scmp.eq.s32.totalorder %s24, 3
      %p179 = por %p177, %p178
      %p181 = scmp.ne.s32.totalorder %s164, %s180
      %p182 = scmp.eq.s32.totalorder %s24, 0
      %p183 = por %p181, %p182
      %p184 = scmp.le.s32.totalorder 1, %s18
      %p185 = scmp.lt.s32.totalorder %s18, 5
      %p186 = pnand %p184, %p185
      %p187 = pneg %p186
      // Predicated region
      $region9: #{tpu_custom_call.1} parent=5 // pred_check
        _
      $region10: #{tpu_custom_call.1} parent=5 // pred_check_branch
        %189 = sbr.rel (%p186) target = $region12
      $region11: #{tpu_custom_call.1} parent=5 // pred_region
        %s190 = ssub.s32 %s18, 1
        // Predicated region
        $region13: #{tpu_custom_call.1} parent=11 // pred_check
          %p191 = pneg %p77
        $region14: #{tpu_custom_call.1} parent=11 // pred_check_branch
          %193 = sbr.rel (%p191) target = $region16
        $region15: #{tpu_custom_call.1} parent=11 // pred_region
          %s195 = ssub.s32 2048, 2048
          %196 = vsyncadd [#allocation6], %s195
          %s197 = sshll.u32 [#allocation5], 4
          %s198 = int_to_ptr.vmem [resolvable:$true] %s197
          %203 = dma.hbm_to_vmem [thread:$0]  %s1, 2048, %s198, [#allocation6], 128, 128, 8
        $region16: #{tpu_custom_call.1} parent=11 // pred_fallthru
          _
        // Predicated region
        $region17: #{tpu_custom_call.1} parent=11 // pred_check
          %p204 = pneg %p98
        $region18: #{tpu_custom_call.1} parent=11 // pred_check_branch
          %206 = sbr.rel (%p204) target = $region20
        $region19: #{tpu_custom_call.1} parent=11 // pred_region
          _
        $region20: #{tpu_custom_call.1} parent=11 // pred_fallthru
          _
      $region12: #{tpu_custom_call.1} parent=5 // pred_fallthru
        _
      %p207 = scmp.lt.s32.totalorder %s18, 4
      // Predicated region
      $region21: #{tpu_custom_call.1} parent=5 // pred_check
        %p208 = pneg %p207
      $region22: #{tpu_custom_call.1} parent=5 // pred_check_branch
        %210 = sbr.rel (%p208) target = $region24
      $region23: #{tpu_custom_call.1} parent=5 // pred_region
        // Predicated region
        $region25: #{tpu_custom_call.1} parent=23 // pred_check
          %p211 = pneg %p50
        $region26: #{tpu_custom_call.1} parent=23 // pred_check_branch
          %213 = sbr.rel (%p211) target = $region28
        $region27: #{tpu_custom_call.1} parent=23 // pred_region
          %s214 = sand.u32 %s18, 1
          %s215 = scalar_lea.sflag [#allocation3], %s214
          %s216 = sand.u32 %s40, 1
          %s217 = smul.addr %s216, 8
          %s218 = scalar_lea.vmem [#allocation2], %s217
          %s220 = ssub.s32 128, 128
          %221 = vsyncadd %s215, %s220
          %s222 = smul.addr %s25, 128
          %s223 = scalar_lea.hbm %s0, %s222
          %s225 = sshll.u32 %s218, 4
          %s226 = int_to_ptr.vmem [resolvable:$true] %s225
          %228 = dma.hbm_to_vmem [thread:$0]  %s223, 128, %s226, %s215
        $region28: #{tpu_custom_call.1} parent=23 // pred_fallthru
          _
        // Predicated region
        $region29: #{tpu_custom_call.1} parent=23 // pred_check
          %p229 = pneg %p118
        $region30: #{tpu_custom_call.1} parent=23 // pred_check_branch
          %231 = sbr.rel (%p229) target = $region32
        $region31: #{tpu_custom_call.1} parent=23 // pred_region
          %s232 = sand.u32 %s18, 1
          %s233 = scalar_lea.sflag [#allocation3], %s232
          %s234 = sand.u32 %s108, 1
          %s235 = smul.addr %s234, 384
          %s236 = scalar_lea.vmem [#allocation7], %s235
          %s238 = ssub.s32 6144, 6144
          %239 = vsyncadd %s233, %s238
          %s240 = smul.addr %s26, 48
          %s241 = smul.addr %s240, 128
          %s242 = scalar_lea.hbm %s3, %s241
          %s243 = sshll.u32 %s236, 4
          %s244 = int_to_ptr.vmem [resolvable:$true] %s243
          %249 = dma.hbm_to_vmem [thread:$0]  %s242, 6144, %s244, %s233, 384, 384, 24
        $region32: #{tpu_custom_call.1} parent=23 // pred_fallthru
          _
        // Predicated region
        $region33: #{tpu_custom_call.1} parent=23 // pred_check
          %p250 = pneg %p144
        $region34: #{tpu_custom_call.1} parent=23 // pred_check_branch
          %252 = sbr.rel (%p250) target = $region36
        $region35: #{tpu_custom_call.1} parent=23 // pred_region
          %p253 = scmp.lt.s32.totalorder %s26, 1
          %s254 = scalar_select %p253, %s26, 1
          %s255 = smul.addr %s254, 3
          %s256 = scalar_lea.vmem %s4, %s255
        $region36: #{tpu_custom_call.1} parent=23 // pred_fallthru
          _
      $region24: #{tpu_custom_call.1} parent=5 // pred_fallthru
        _
      %p257 = scmp.le.s32.totalorder 1, %s18
      %p258 = scmp.lt.s32.totalorder %s18, 5
      %p259 = pnand %p257, %p258
      %p260 = pneg %p259
      // Predicated region
      $region37: #{tpu_custom_call.1} parent=5 // pred_check
        _
      $region38: #{tpu_custom_call.1} parent=5 // pred_check_branch
        %262 = sbr.rel (%p259) target = $region40
      $region39: #{tpu_custom_call.1} parent=5 // pred_region
        %s263 = ssub.s32 %s18, 1
        %s264 = sand.u32 %s23, 1
        %s265 = scalar_lea.sflag [#allocation3], %s264
        %s266 = sand.u32 %s43, 1
        %s267 = smul.addr %s266, 8
        %s268 = scalar_lea.vmem [#allocation2], %s267
        // Predicated region
        $region41: #{tpu_custom_call.1} parent=39 // pred_check
          %p269 = pneg %p56
        $region42: #{tpu_custom_call.1} parent=39 // pred_check_branch
          %271 = sbr.rel (%p269) target = $region44
        $region43: #{tpu_custom_call.1} parent=39 // pred_region
          %272 = dma.done %s265, 128
        $region44: #{tpu_custom_call.1} parent=39 // pred_fallthru
          _
        // Predicated region
        $region45: #{tpu_custom_call.1} parent=39 // pred_check
          %p273 = pneg %p77
        $region46: #{tpu_custom_call.1} parent=39 // pred_check_branch
          %275 = sbr.rel (%p273) target = $region48
        $region47: #{tpu_custom_call.1} parent=39 // pred_region
          %276 = dma.done [#allocation6], 2048
        $region48: #{tpu_custom_call.1} parent=39 // pred_fallthru
          _
        %s277 = sand.u32 %s23, 1
        %s278 = scalar_lea.sflag [#allocation3], %s277
        %s279 = sand.u32 %s111, 1
        %s280 = smul.addr %s279, 384
        %s281 = scalar_lea.vmem [#allocation7], %s280
        // Predicated region
        $region49: #{tpu_custom_call.1} parent=39 // pred_check
          %p282 = pneg %p124
        $region50: #{tpu_custom_call.1} parent=39 // pred_check_branch
          %284 = sbr.rel (%p282) target = $region52
        $region51: #{tpu_custom_call.1} parent=39 // pred_region
          %285 = dma.done %s278, 6144
        $region52: #{tpu_custom_call.1} parent=39 // pred_fallthru
          _
        %s286 = sand.u32 %s23, 1
        %s287 = scalar_lea.sflag [#allocation3], %s286
        %s288 = sand.u32 %s43, 1
        %s289 = smul.addr %s288, 8
        %s290 = scalar_lea.vmem [#allocation2], %s289
        %p291 = pneg %p56
        %p292 = pneg %p53
        %p293 = pneg %p77
        %p294 = pneg %p74
        %p295 = pneg %p98
        %p296 = pneg %p95
        %s297 = sand.u32 %s23, 1
        %s298 = scalar_lea.sflag [#allocation3], %s297
        %s299 = sand.u32 %s111, 1
        %s300 = smul.addr %s299, 384
        %s301 = scalar_lea.vmem [#allocation7], %s300
        %p302 = pneg %p124
        %p303 = pneg %p121
        %p304 = scmp.lt.s32.totalorder %s28, 1
        %s305 = scalar_select %p304, %s28, 1
        %s306 = smul.addr %s305, 3
        %s307 = scalar_lea.vmem %s4, %s306
        %p308 = pneg %p150
        %p309 = pneg %p147
        %p310 = pneg %p176
        %p311 = pneg %p173
        %s312 = sand.u32 %s163, 1
        %s313 = scalar_lea.sflag [#allocation4], %s312
        %s314 = sand.u32 %s163, 1
        %s315 = smul.addr %s314, 8
        %s316 = scalar_lea.vmem [#allocation8], %s315
        %p317 = scmp.lt.s32.totalorder %s28, 1
        %s318 = scalar_select %p317, %s28, 1
        %s319 = smul.addr %s318, 3
        %s320 = scalar_lea.vmem %s4, %s319
        %p321 = scmp.eq.s32.totalorder %s28, 0
        // Predicated region
        $region53: #{tpu_custom_call.1} parent=39 // pred_check
          %p322 = pneg %p321
        $region54: #{tpu_custom_call.1} parent=39 // pred_check_branch
          %324 = sbr.rel (%p322) target = $region56
        $region55: #{tpu_custom_call.1} parent=39 // pred_region
          %v325 = vld [vmem:[%s268] sm:$0xff]
          %v326 = vld [vmem:[#allocation5] sm:$0xff]
          %v327 = vld [vmem:[#allocation5 + $0x8] sm:$0xff]
          %v328 = vld [vmem:[#allocation5 + $0x10] sm:$0xff]
          %v329 = vld [vmem:[#allocation5 + $0x18] sm:$0xff]
          %v330 = vld [vmem:[#allocation5 + $0x20] sm:$0xff]
          %v331 = vld [vmem:[#allocation5 + $0x28] sm:$0xff]
          %v332 = vld [vmem:[#allocation5 + $0x30] sm:$0xff]
          %v333 = vld [vmem:[#allocation5 + $0x38] sm:$0xff]
          %v334 = vld [vmem:[#allocation5 + $0x40] sm:$0xff]
          %v335 = vld [vmem:[#allocation5 + $0x48] sm:$0xff]
          %v336 = vld [vmem:[#allocation5 + $0x50] sm:$0xff]
          %v337 = vld [vmem:[#allocation5 + $0x58] sm:$0xff]
          %v338 = vld [vmem:[#allocation5 + $0x60] sm:$0xff]
          %v339 = vld [vmem:[#allocation5 + $0x68] sm:$0xff]
          %v340 = vld [vmem:[#allocation5 + $0x70] sm:$0xff]
          %v341 = vld [vmem:[#allocation5 + $0x78] sm:$0xff]
          %v342 = vld [vmem:[%s2] sm:$0x1]
          %v344 = vlaneseq
          %v345 = vshrl.u32 %v344, 7
          %v346 = vsub.s32 0, %v345
          %v347 = vrot.slane %v342, %v346
          %349 = vmatprep.subr.mxu0 0.0
          %350 = vmatpush1.msra.mxu0 %v326
          %351 = vmatprep.subr.mxu0 0.0
          %352 = vmatpush1.msra.mxu0 %v327
          %353 = vmatprep.subr.mxu0 0.0
          %354 = vmatpush1.msra.mxu0 %v328
          %355 = vmatprep.subr.mxu0 0.0
          %356 = vmatpush1.msra.mxu0 %v329
          %357 = vmatprep.subr.mxu0 0.0
          %358 = vmatpush1.msra.mxu0 %v330
          %359 = vmatprep.subr.mxu0 0.0
          %360 = vmatpush1.msra.mxu0 %v331
          %361 = vmatprep.subr.mxu0 0.0
          %362 = vmatpush1.msra.mxu0 %v332
          %363 = vmatprep.subr.mxu0 0.0
          %364 = vmatpush1.msra.mxu0 %v333
          %365 = vmatprep.subr.mxu0 0.0
          %366 = vmatpush1.msra.mxu0 %v334
          %367 = vmatprep.subr.mxu0 0.0
          %368 = vmatpush1.msra.mxu0 %v335
          %369 = vmatprep.subr.mxu0 0.0
          %370 = vmatpush1.msra.mxu0 %v336
          %371 = vmatprep.subr.mxu0 0.0
          %372 = vmatpush1.msra.mxu0 %v337
          %373 = vmatprep.subr.mxu0 0.0
          %374 = vmatpush1.msra.mxu0 %v338
          %375 = vmatprep.subr.mxu0 0.0
          %376 = vmatpush1.msra.mxu0 %v339
          %377 = vmatprep.subr.mxu0 0.0
          %378 = vmatpush1.msra.mxu0 %v340
          %379 = vmatprep.subr.mxu0 0.0
          %380 = vmatpush1.msra.mxu0 %v341
          %381 = vmatprep.subr.mxu0 0.0
          %382 = vmatpush1.msra.mxu0 0.0
          %383 = vmatprep.subr.mxu0 0.0
          %384 = vmatpush1.msra.mxu0 0.0
          %385 = vmatprep.subr.mxu0 0.0
          %386 = vmatpush1.msra.mxu0 0.0
          %387 = vmatprep.subr.mxu0 0.0
          %388 = vmatpush1.msra.mxu0 0.0
          %389 = vmatprep.subr.mxu0 0.0
          %390 = vmatpush1.msra.mxu0 0.0
          %391 = vmatprep.subr.mxu0 0.0
          %392 = vmatpush1.msra.mxu0 0.0
          %393 = vmatprep.subr.mxu0 0.0
          %394 = vmatpush1.msra.mxu0 0.0
          %395 = vmatprep.subr.mxu0 0.0
          %396 = vmatpush1.msra.mxu0 0.0
          %397 = vmatprep.subr.mxu0 0.0
          %398 = vmatpush1.msra.mxu0 0.0
          %399 = vmatprep.subr.mxu0 0.0
          %400 = vmatpush1.msra.mxu0 0.0
          %401 = vmatprep.subr.mxu0 0.0
          %402 = vmatpush1.msra.mxu0 0.0
          %403 = vmatprep.subr.mxu0 0.0
          %404 = vmatpush1.msra.mxu0 0.0
          %405 = vmatprep.subr.mxu0 0.0
          %406 = vmatpush1.msra.mxu0 0.0
          %407 = vmatprep.subr.mxu0 0.0
          %408 = vmatpush1.msra.mxu0 0.0
          %409 = vmatprep.subr.mxu0 0.0
          %410 = vmatpush1.msra.mxu0 0.0
          %411 = vmatprep.subr.mxu0 0.0
          %412 = vmatpush1.msra.mxu0 0.0
          %413 = vmatprep.mubr.f32.mxu0 0.0
          %414 = vmatmul.mubr.f32.gmra.mrb[0].mxu0 %v325
          %v415 = vpop.f32.mrb[0].mxu0
          %v416 = vadd.f32 %v347, %v415
          %v417 = vpop.f32.mrb[0].mxu0
          %418 = vdwg.mxu0
          %v419 = vmax.f32 %v416, 0.0
          %420 = vst [vmem:[%s316] sm:$0xff] %v419
        $region56: #{tpu_custom_call.1} parent=39 // pred_fallthru
          _
        %v421 = vld [vmem:[%s316] sm:$0xff]
        %v422 = vld [vmem:[%s281] sm:$0xff]
        %v423 = vld [vmem:[%s281 + $0x8] sm:$0xff]
        %v424 = vld [vmem:[%s281 + $0x10] sm:$0xff]
        %v425 = vld [vmem:[%s281 + $0x18] sm:$0xff]
        %v426 = vld [vmem:[%s281 + $0x20] sm:$0xff]
        %v427 = vld [vmem:[%s281 + $0x28] sm:$0xff]
        %v428 = vld [vmem:[%s281 + $0x30] sm:$0xff]
        %v429 = vld [vmem:[%s281 + $0x38] sm:$0xff]
        %v430 = vld [vmem:[%s281 + $0x40] sm:$0xff]
        %v431 = vld [vmem:[%s281 + $0x48] sm:$0xff]
        %v432 = vld [vmem:[%s281 + $0x50] sm:$0xff]
        %v433 = vld [vmem:[%s281 + $0x58] sm:$0xff]
        %v434 = vld [vmem:[%s281 + $0x60] sm:$0xff]
        %v435 = vld [vmem:[%s281 + $0x68] sm:$0xff]
        %v436 = vld [vmem:[%s281 + $0x70] sm:$0xff]
        %v437 = vld [vmem:[%s281 + $0x78] sm:$0xff]
        %v438 = vld [vmem:[%s281 + $0x80] sm:$0xff]
        %v439 = vld [vmem:[%s281 + $0x88] sm:$0xff]
        %v440 = vld [vmem:[%s281 + $0x90] sm:$0xff]
        %v441 = vld [vmem:[%s281 + $0x98] sm:$0xff]
        %v442 = vld [vmem:[%s281 + $0xa0] sm:$0xff]
        %v443 = vld [vmem:[%s281 + $0xa8] sm:$0xff]
        %v444 = vld [vmem:[%s281 + $0xb0] sm:$0xff]
        %v445 = vld [vmem:[%s281 + $0xb8] sm:$0xff]
        %v446 = vld [vmem:[%s281 + $0xc0] sm:$0xff]
        %v447 = vld [vmem:[%s281 + $0xc8] sm:$0xff]
        %v448 = vld [vmem:[%s281 + $0xd0] sm:$0xff]
        %v449 = vld [vmem:[%s281 + $0xd8] sm:$0xff]
        %v450 = vld [vmem:[%s281 + $0xe0] sm:$0xff]
        %v451 = vld [vmem:[%s281 + $0xe8] sm:$0xff]
        %v452 = vld [vmem:[%s281 + $0xf0] sm:$0xff]
        %v453 = vld [vmem:[%s281 + $0xf8] sm:$0xff]
        %v454 = vld [vmem:[%s281 + $0x100] sm:$0xff]
        %v455 = vld [vmem:[%s281 + $0x108] sm:$0xff]
        %v456 = vld [vmem:[%s281 + $0x110] sm:$0xff]
        %v457 = vld [vmem:[%s281 + $0x118] sm:$0xff]
        %v458 = vld [vmem:[%s281 + $0x120] sm:$0xff]
        %v459 = vld [vmem:[%s281 + $0x128] sm:$0xff]
        %v460 = vld [vmem:[%s281 + $0x130] sm:$0xff]
        %v461 = vld [vmem:[%s281 + $0x138] sm:$0xff]
        %v462 = vld [vmem:[%s281 + $0x140] sm:$0xff]
        %v463 = vld [vmem:[%s281 + $0x148] sm:$0xff]
        %v464 = vld [vmem:[%s281 + $0x150] sm:$0xff]
        %v465 = vld [vmem:[%s281 + $0x158] sm:$0xff]
        %v466 = vld [vmem:[%s281 + $0x160] sm:$0xff]
        %v467 = vld [vmem:[%s281 + $0x168] sm:$0xff]
        %v468 = vld [vmem:[%s281 + $0x170] sm:$0xff]
        %v469 = vld [vmem:[%s281 + $0x178] sm:$0xff]
        %v470 = vld [vmem:[%s320] sm:$0x7]
        %v472 = vlaneseq
        %v473 = vshrl.u32 %v472, 7
        %v474 = vsub.s32 0, %v473
        %v475 = vrot.slane %v470, %v474
        %v476 = vlaneseq
        %v477 = vshrl.u32 %v476, 7
        %v478 = vsub.s32 1, %v477
        %v479 = vrot.slane %v470, %v478
        %v480 = vlaneseq
        %v481 = vshrl.u32 %v480, 7
        %v482 = vsub.s32 2, %v481
        %v483 = vrot.slane %v470, %v482
        %487 = vmatprep.subr.mxu0 %v423
        %488 = vmatpush1.msra.mxu0 %v422
        %489 = vmatprep.subr.mxu0 %v426
        %490 = vmatpush1.msra.mxu0 %v425
        %491 = vmatprep.subr.mxu0 %v429
        %492 = vmatpush1.msra.mxu0 %v428
        %493 = vmatprep.subr.mxu0 %v432
        %494 = vmatpush1.msra.mxu0 %v431
        %495 = vmatprep.subr.mxu0 %v435
        %496 = vmatpush1.msra.mxu0 %v434
        %497 = vmatprep.subr.mxu0 %v438
        %498 = vmatpush1.msra.mxu0 %v437
        %499 = vmatprep.subr.mxu0 %v441
        %500 = vmatpush1.msra.mxu0 %v440
        %501 = vmatprep.subr.mxu0 %v444
        %502 = vmatpush1.msra.mxu0 %v443
        %503 = vmatprep.subr.mxu0 %v447
        %504 = vmatpush1.msra.mxu0 %v446
        %505 = vmatprep.subr.mxu0 %v450
        %506 = vmatpush1.msra.mxu0 %v449
        %507 = vmatprep.subr.mxu0 %v453
        %508 = vmatpush1.msra.mxu0 %v452
        %509 = vmatprep.subr.mxu0 %v456
        %510 = vmatpush1.msra.mxu0 %v455
        %511 = vmatprep.subr.mxu0 %v459
        %512 = vmatpush1.msra.mxu0 %v458
        %513 = vmatprep.subr.mxu0 %v462
        %514 = vmatpush1.msra.mxu0 %v461
        %515 = vmatprep.subr.mxu0 %v465
        %516 = vmatpush1.msra.mxu0 %v464
        %517 = vmatprep.subr.mxu0 %v468
        %518 = vmatpush1.msra.mxu0 %v467
        %519 = vmatprep.subr.mxu0 0.0
        %520 = vmatpush1.msra.mxu0 0.0
        %521 = vmatprep.subr.mxu0 0.0
        %522 = vmatpush1.msra.mxu0 0.0
        %523 = vmatprep.subr.mxu0 0.0
        %524 = vmatpush1.msra.mxu0 0.0
        %525 = vmatprep.subr.mxu0 0.0
        %526 = vmatpush1.msra.mxu0 0.0
        %527 = vmatprep.subr.mxu0 0.0
        %528 = vmatpush1.msra.mxu0 0.0
        %529 = vmatprep.subr.mxu0 0.0
        %530 = vmatpush1.msra.mxu0 0.0
        %531 = vmatprep.subr.mxu0 0.0
        %532 = vmatpush1.msra.mxu0 0.0
        %533 = vmatprep.subr.mxu0 0.0
        %534 = vmatpush1.msra.mxu0 0.0
        %535 = vmatprep.subr.mxu0 0.0
        %536 = vmatpush1.msra.mxu0 0.0
        %537 = vmatprep.subr.mxu0 0.0
        %538 = vmatpush1.msra.mxu0 0.0
        %539 = vmatprep.subr.mxu0 0.0
        %540 = vmatpush1.msra.mxu0 0.0
        %541 = vmatprep.subr.mxu0 0.0
        %542 = vmatpush1.msra.mxu0 0.0
        %543 = vmatprep.subr.mxu0 0.0
        %544 = vmatpush1.msra.mxu0 0.0
        %545 = vmatprep.subr.mxu0 0.0
        %546 = vmatpush1.msra.mxu0 0.0
        %547 = vmatprep.subr.mxu0 0.0
        %548 = vmatpush1.msra.mxu0 0.0
        %549 = vmatprep.subr.mxu0 0.0
        %550 = vmatpush1.msra.mxu0 0.0
        %551 = vmatprep.mubr.f32.mxu0 0.0
        %552 = vmatmul.mubr.f32.gmra.mrb[0].mxu0 %v421
        %v553 = vpop.f32.mrb[0].mxu0
        %v554 = vadd.f32 %v475, %v553
        %v555 = vpop.f32.mrb[0].mxu0
        %v556 = vadd.f32 %v479, %v555
        %557 = vdwg.mxu0
        %558 = vmatprep.subr.mxu0 0.0
        %559 = vmatpush1.msra.mxu0 %v424
        %560 = vmatprep.subr.mxu0 0.0
        %561 = vmatpush1.msra.mxu0 %v427
        %562 = vmatprep.subr.mxu0 0.0
        %563 = vmatpush1.msra.mxu0 %v430
        %564 = vmatprep.subr.mxu0 0.0
        %565 = vmatpush1.msra.mxu0 %v433
        %566 = vmatprep.subr.mxu0 0.0
        %567 = vmatpush1.msra.mxu0 %v436
        %568 = vmatprep.subr.mxu0 0.0
        %569 = vmatpush1.msra.mxu0 %v439
        %570 = vmatprep.subr.mxu0 0.0
        %571 = vmatpush1.msra.mxu0 %v442
        %572 = vmatprep.subr.mxu0 0.0
        %573 = vmatpush1.msra.mxu0 %v445
        %574 = vmatprep.subr.mxu0 0.0
        %575 = vmatpush1.msra.mxu0 %v448
        %576 = vmatprep.subr.mxu0 0.0
        %577 = vmatpush1.msra.mxu0 %v451
        %578 = vmatprep.subr.mxu0 0.0
        %579 = vmatpush1.msra.mxu0 %v454
        %580 = vmatprep.subr.mxu0 0.0
        %581 = vmatpush1.msra.mxu0 %v457
        %582 = vmatprep.subr.mxu0 0.0
        %583 = vmatpush1.msra.mxu0 %v460
        %584 = vmatprep.subr.mxu0 0.0
        %585 = vmatpush1.msra.mxu0 %v463
        %586 = vmatprep.subr.mxu0 0.0
        %587 = vmatpush1.msra.mxu0 %v466
        %588 = vmatprep.subr.mxu0 0.0
        %589 = vmatpush1.msra.mxu0 %v469
        %590 = vmatprep.subr.mxu0 0.0
        %591 = vmatpush1.msra.mxu0 0.0
        %592 = vmatprep.subr.mxu0 0.0
        %593 = vmatpush1.msra.mxu0 0.0
        %594 = vmatprep.subr.mxu0 0.0
        %595 = vmatpush1.msra.mxu0 0.0
        %596 = vmatprep.subr.mxu0 0.0
        %597 = vmatpush1.msra.mxu0 0.0
        %598 = vmatprep.subr.mxu0 0.0
        %599 = vmatpush1.msra.mxu0 0.0
        %600 = vmatprep.subr.mxu0 0.0
        %601 = vmatpush1.msra.mxu0 0.0
        %602 = vmatprep.subr.mxu0 0.0
        %603 = vmatpush1.msra.mxu0 0.0
        %604 = vmatprep.subr.mxu0 0.0
        %605 = vmatpush1.msra.mxu0 0.0
        %606 = vmatprep.subr.mxu0 0.0
        %607 = vmatpush1.msra.mxu0 0.0
        %608 = vmatprep.subr.mxu0 0.0
        %609 = vmatpush1.msra.mxu0 0.0
        %610 = vmatprep.subr.mxu0 0.0
        %611 = vmatpush1.msra.mxu0 0.0
        %612 = vmatprep.subr.mxu0 0.0
        %613 = vmatpush1.msra.mxu0 0.0
        %614 = vmatprep.subr.mxu0 0.0
        %615 = vmatpush1.msra.mxu0 0.0
        %616 = vmatprep.subr.mxu0 0.0
        %617 = vmatpush1.msra.mxu0 0.0
        %618 = vmatprep.subr.mxu0 0.0
        %619 = vmatpush1.msra.mxu0 0.0
        %620 = vmatprep.subr.mxu0 0.0
        %621 = vmatpush1.msra.mxu0 0.0
        %622 = vmatprep.mubr.f32.mxu0 0.0
        %623 = vmatmul.mubr.f32.gmra.mrb[0].mxu0 %v421
        %v624 = vpop.f32.mrb[0].mxu0
        %v625 = vadd.f32 %v483, %v624
        %v626 = vpop.f32.mrb[0].mxu0
        %627 = vdwg.mxu0
        %v628 = vmul.f32 %v554, 0.17677669
        %629 = vmatprep.subr.mxu0 0.0
        %630 = vmatpush1.xpose.msra.mxu0 %v556
        %631 = vmatprep.subr.mxu0 0.0
        %632 = vmatpush1.xpose.msra.mxu0 0.0
        %633 = vmatprep.subr.mxu0 0.0
        %634 = vmatpush1.xpose.msra.mxu0 0.0
        %635 = vmatprep.subr.mxu0 0.0
        %636 = vmatpush1.xpose.msra.mxu0 0.0
        %637 = vmatprep.subr.mxu0 0.0
        %638 = vmatpush1.xpose.msra.mxu0 0.0
        %639 = vmatprep.subr.mxu0 0.0
        %640 = vmatpush1.xpose.msra.mxu0 0.0
        %641 = vmatprep.subr.mxu0 0.0
        %642 = vmatpush1.xpose.msra.mxu0 0.0
        %643 = vmatprep.subr.mxu0 0.0
        %644 = vmatpush1.xpose.msra.mxu0 0.0
        %645 = vmatprep.subr.mxu0 0.0
        %646 = vmatpush1.xpose.msra.mxu0 0.0
        %647 = vmatprep.subr.mxu0 0.0
        %648 = vmatpush1.xpose.msra.mxu0 0.0
        %649 = vmatprep.subr.mxu0 0.0
        %650 = vmatpush1.xpose.msra.mxu0 0.0
        %651 = vmatprep.subr.mxu0 0.0
        %652 = vmatpush1.xpose.msra.mxu0 0.0
        %653 = vmatprep.subr.mxu0 0.0
        %654 = vmatpush1.xpose.msra.mxu0 0.0
        %655 = vmatprep.subr.mxu0 0.0
        %656 = vmatpush1.xpose.msra.mxu0 0.0
        %657 = vmatprep.subr.mxu0 0.0
        %658 = vmatpush1.xpose.msra.mxu0 0.0
        %659 = vmatprep.subr.mxu0 0.0
        %660 = vmatpush1.xpose.msra.mxu0 0.0
        %661 = vmatprep.subr.mxu0 0.0
        %662 = vmatpush1.xpose.msra.mxu0 0.0
        %663 = vmatprep.subr.mxu0 0.0
        %664 = vmatpush1.xpose.msra.mxu0 0.0
        %665 = vmatprep.subr.mxu0 0.0
        %666 = vmatpush1.xpose.msra.mxu0 0.0
        %667 = vmatprep.subr.mxu0 0.0
        %668 = vmatpush1.xpose.msra.mxu0 0.0
        %669 = vmatprep.subr.mxu0 0.0
        %670 = vmatpush1.xpose.msra.mxu0 0.0
        %671 = vmatprep.subr.mxu0 0.0
        %672 = vmatpush1.xpose.msra.mxu0 0.0
        %673 = vmatprep.subr.mxu0 0.0
        %674 = vmatpush1.xpose.msra.mxu0 0.0
        %675 = vmatprep.subr.mxu0 0.0
        %676 = vmatpush1.xpose.msra.mxu0 0.0
        %677 = vmatprep.subr.mxu0 0.0
        %678 = vmatpush1.xpose.msra.mxu0 0.0
        %679 = vmatprep.subr.mxu0 0.0
        %680 = vmatpush1.xpose.msra.mxu0 0.0
        %681 = vmatprep.subr.mxu0 0.0
        %682 = vmatpush1.xpose.msra.mxu0 0.0
        %683 = vmatprep.subr.mxu0 0.0
        %684 = vmatpush1.xpose.msra.mxu0 0.0
        %685 = vmatprep.subr.mxu0 0.0
        %686 = vmatpush1.xpose.msra.mxu0 0.0
        %687 = vmatprep.subr.mxu0 0.0
        %688 = vmatpush1.xpose.msra.mxu0 0.0
        %689 = vmatprep.subr.mxu0 0.0
        %690 = vmatpush1.xpose.msra.mxu0 0.0
        %691 = vmatprep.subr.mxu0 0.0
        %692 = vmatpush1.xpose.msra.mxu0 0.0
        %693 = vmatprep.mubr.f32.mxu0 0.0
        %694 = vmatmul.mubr.f32.gmra.mrb[0].mxu0 %v628
        %v695 = vpop.f32.mrb[0].mxu0
        %v696 = vadd.f32 0.0, %v695
        %v697 = vpop.f32.mrb[0].mxu0
        %698 = vdwg.mxu0
        %vm699 = vcmask 64512
        %v700 = vsel %vm699, %v696, -inf
        %701 = vmax.xlane.f32.xlu0 %v700
        %v702 = vpop.xlane.xlu0 %701
        %v703 = vsub.f32 %v696, %v702
        %v704 = vmul.f32 %v703, 1.442695
        %v705 = vpow.pop %v704
        %v706 = vsel %vm699, %v705, 0.0
        %707 = vadd.xlane.f32.xlu0 %v706
        %v708 = vpop.xlane.xlu0 %707
        %v709 = vrcp.pop %v708
        %v710 = vmul.f32 %v705, %v709
        %v712 = vsel %vm699, %v710, 0
        %714 = vmatprep.subr.mxu0 0.0
        %715 = vmatpush1.msra.mxu0 %v625
        %716 = vmatprep.subr.mxu0 0.0
        %717 = vmatpush1.msra.mxu0 0.0
        %718 = vmatprep.subr.mxu0 0.0
        %719 = vmatpush1.msra.mxu0 0.0
        %720 = vmatprep.subr.mxu0 0.0
        %721 = vmatpush1.msra.mxu0 0.0
        %722 = vmatprep.subr.mxu0 0.0
        %723 = vmatpush1.msra.mxu0 0.0
        %724 = vmatprep.subr.mxu0 0.0
        %725 = vmatpush1.msra.mxu0 0.0
        %726 = vmatprep.subr.mxu0 0.0
        %727 = vmatpush1.msra.mxu0 0.0
        %728 = vmatprep.subr.mxu0 0.0
        %729 = vmatpush1.msra.mxu0 0.0
        %730 = vmatprep.subr.mxu0 0.0
        %731 = vmatpush1.msra.mxu0 0.0
        %732 = vmatprep.subr.mxu0 0.0
        %733 = vmatpush1.msra.mxu0 0.0
        %734 = vmatprep.subr.mxu0 0.0
        %735 = vmatpush1.msra.mxu0 0.0
        %736 = vmatprep.subr.mxu0 0.0
        %737 = vmatpush1.msra.mxu0 0.0
        %738 = vmatprep.subr.mxu0 0.0
        %739 = vmatpush1.msra.mxu0 0.0
        %740 = vmatprep.subr.mxu0 0.0
        %741 = vmatpush1.msra.mxu0 0.0
        %742 = vmatprep.subr.mxu0 0.0
        %743 = vmatpush1.msra.mxu0 0.0
        %744 = vmatprep.subr.mxu0 0.0
        %745 = vmatpush1.msra.mxu0 0.0
        %746 = vmatprep.subr.mxu0 0.0
        %747 = vmatpush1.msra.mxu0 0.0
        %748 = vmatprep.subr.mxu0 0.0
        %749 = vmatpush1.msra.mxu0 0.0
        %750 = vmatprep.subr.mxu0 0.0
        %751 = vmatpush1.msra.mxu0 0.0
        %752 = vmatprep.subr.mxu0 0.0
        %753 = vmatpush1.msra.mxu0 0.0
        %754 = vmatprep.subr.mxu0 0.0
        %755 = vmatpush1.msra.mxu0 0.0
        %756 = vmatprep.subr.mxu0 0.0
        %757 = vmatpush1.msra.mxu0 0.0
        %758 = vmatprep.subr.mxu0 0.0
        %759 = vmatpush1.msra.mxu0 0.0
        %760 = vmatprep.subr.mxu0 0.0
        %761 = vmatpush1.msra.mxu0 0.0
        %762 = vmatprep.subr.mxu0 0.0
        %763 = vmatpush1.msra.mxu0 0.0
        %764 = vmatprep.subr.mxu0 0.0
        %765 = vmatpush1.msra.mxu0 0.0
        %766 = vmatprep.subr.mxu0 0.0
        %767 = vmatpush1.msra.mxu0 0.0
        %768 = vmatprep.subr.mxu0 0.0
        %769 = vmatpush1.msra.mxu0 0.0
        %770 = vmatprep.subr.mxu0 0.0
        %771 = vmatpush1.msra.mxu0 0.0
        %772 = vmatprep.subr.mxu0 0.0
        %773 = vmatpush1.msra.mxu0 0.0
        %774 = vmatprep.subr.mxu0 0.0
        %775 = vmatpush1.msra.mxu0 0.0
        %776 = vmatprep.subr.mxu0 0.0
        %777 = vmatpush1.msra.mxu0 0.0
        %778 = vmatprep.mubr.f32.mxu0 0.0
        %779 = vmatmul.mubr.f32.gmra.mrb[0].mxu0 %v712
        %v780 = vpop.f32.mrb[0].mxu0
        %v781 = vadd.f32 0.0, %v780
        %v782 = vpop.f32.mrb[0].mxu0
        %783 = vdwg.mxu0
        %v784 = vadd.f32 %v421, %v781
        %785 = vst [vmem:[%s316] sm:$0xff] %v784
        %s786 = sand.u32 %s163, 1
        %s787 = scalar_lea.sflag [#allocation4], %s786
        %s788 = sand.u32 %s163, 1
        %s789 = smul.addr %s788, 8
        %s790 = scalar_lea.vmem [#allocation8], %s789
        // Predicated region
        $region57: #{tpu_custom_call.1} parent=39 // pred_check
          %p791 = pneg %p173
        $region58: #{tpu_custom_call.1} parent=39 // pred_check_branch
          %793 = sbr.rel (%p791) target = $region60
        $region59: #{tpu_custom_call.1} parent=39 // pred_region
          %s795 = ssub.s32 128, 128
          %796 = vsyncadd %s787, %s795
          %s797 = smul.addr %s27, 128
          %s798 = scalar_lea.hbm %s5, %s797
          %s800 = sshll.u32 %s790, 4
          %s801 = int_to_ptr.vmem [resolvable:$true] %s800
          %803 = dma.vmem_to_hbm [thread:$0]  %s801, 128, %s798, %s787
        $region60: #{tpu_custom_call.1} parent=39 // pred_fallthru
          _
      $region40: #{tpu_custom_call.1} parent=5 // pred_fallthru
        _
      %p804 = scmp.le.s32.totalorder 2, %s18
      // Predicated region
      $region61: #{tpu_custom_call.1} parent=5 // pred_check
        %p805 = pneg %p804
      $region62: #{tpu_custom_call.1} parent=5 // pred_check_branch
        %807 = sbr.rel (%p805) target = $region64
      $region63: #{tpu_custom_call.1} parent=5 // pred_region
        %s808 = ssub.s32 %s18, 2
        // Predicated region
        $region65: #{tpu_custom_call.1} parent=63 // pred_check
          %p809 = pneg %p179
        $region66: #{tpu_custom_call.1} parent=63 // pred_check_branch
          %811 = sbr.rel (%p809) target = $region68
        $region67: #{tpu_custom_call.1} parent=63 // pred_region
          %s812 = sand.u32 %s164, 1
          %s813 = scalar_lea.sflag [#allocation4], %s812
          %s814 = sand.u32 %s164, 1
          %s815 = smul.addr %s814, 8
          %s816 = scalar_lea.vmem [#allocation8], %s815
          %817 = dma.done %s813, 128
        $region68: #{tpu_custom_call.1} parent=63 // pred_fallthru
          _
      $region64: #{tpu_custom_call.1} parent=5 // pred_fallthru
        _
    $region6: #{tpu_custom_call.1} parent=1 // loop_footer
      %s22 = sadd.s32 1, %s18
    $region7: #{tpu_custom_call.1} parent=1 // loop_footer_branch
      %17 = sbr.rel target = $region3
    $region8: #{tpu_custom_call.1} parent=1 // loop_exit
      _
    %818 = vsyncpa [#allocation3], 1
    %s819 = scalar_lea.sflag [#allocation3], 1
    %820 = vsyncpa %s819, 1
    %821 = vsyncpa [#allocation6], 1
    %822 = vsyncpa [#allocation4], 1
    %s823 = scalar_lea.sflag [#allocation4], 1
    %824 = vsyncpa %s823, 1

</llo_original>
